<compile_context>
chip_gen: v7x
topology: tpu7x:2x2x1
jax: 0.10.0
libtpu: 0.0.40
codegen_flags: <defaults>
</compile_context>

<pallas_src>
import functools

import jax
import jax.numpy as jnp
from jax.experimental import pallas as pl
from jax.experimental.pallas import tpu as pltpu


def _round_up(x, m):
    return ((x + m - 1) // m) * m


# ----------------------------------------------------------------------------
# Pallas kernels
# ----------------------------------------------------------------------------

def linear_kernel(x_ref, w_ref, b_ref, o_ref, *, activation="none"):
    """y = act(x @ w + b). bf16 matmul, f32 accumulate, activation fused."""
    y = jnp.dot(x_ref[...].astype(jnp.bfloat16), w_ref[...].astype(jnp.bfloat16),
                preferred_element_type=jnp.float32) + b_ref[...]
    if activation == "tanh":
        y = jnp.tanh(y)
    o_ref[...] = y.astype(o_ref.dtype)


def gru_recur_kernel(gi_ref, m_ref, whh_ref, bhh_ref, out_ref, hlast_ref,
                     h_scr, o_scr, *, tc):
    """One grid step = one chunk of `tc` encoder timesteps.
    gi = x@Wih+bih is precomputed outside the recurrence (lane-dense MXU
    matmul); only the h@Whh recurrence runs here."""
    c = pl.program_id(0)
    B, H = h_scr.shape

    @pl.when(c == 0)
    def _():
        h_scr[...] = jnp.zeros_like(h_scr)

    whh = whh_ref[...]                      # [H, 3H] bf16
    bhh = bhh_ref[...]                      # [1, 3H] f32
    gi_all = gi_ref[...]                    # [B, tc, 3H] f32 (includes b_ih)
    m_all = m_ref[...]                      # [B, tc, 1]  1.0 in-seq, 0.0 pad

    for i in range(tc):                     # short fixed chunk, trace-unrolled
        gi = gi_all[:, i, :]                # [B, 3H]
        m = m_all[:, i, :]                  # [B, 1]
        h = h_scr[...]                      # [B, H] f32
        gh = jnp.dot(h.astype(jnp.bfloat16), whh,
                     preferred_element_type=jnp.float32) + bhh
        r = jax.nn.sigmoid(gi[:, 0:H] + gh[:, 0:H])
        z = jax.nn.sigmoid(gi[:, H:2 * H] + gh[:, H:2 * H])
        n = jnp.tanh(gi[:, 2 * H:3 * H] + r * gh[:, 2 * H:3 * H])
        h_new = (1.0 - z) * n + z * h
        # emulate pack_padded_sequence: freeze hidden past seq end, zero outputs
        h_new = m * h_new + (1.0 - m) * h
        h_scr[...] = h_new
        o_scr[:, i:i + 1, :] = (h_new * m)[:, None, :]

    out_ref[...] = o_scr[...].astype(out_ref.dtype)     # single bf16 block store

    @pl.when(c == pl.num_programs(0) - 1)
    def _():
        hlast_ref[...] = h_scr[...]


def fused_decoder_kernel(embed_ref, enc_ref, enc_mask_ref, term_ref, term_mask_ref,
                         o_s_ref, o_term_ref, h0_ref,
                         wih_ref, whh_ref, bih_ref, bhh_ref,
                         wa_ref_ref, wa_term_ref, w_out_ref, b_out_ref,
                         dist_ref, tok_ref,
                         h_scr, tok_scr, *, sos_id, unk_id):
    """One grid step = one greedy decode step; state + weights stay in VMEM."""
    t = pl.program_id(0)
    B, H = h_scr.shape
    V, _ = embed_ref.shape
    ext_v = dist_ref.shape[-1]              # true extended vocab (V + oov)
    ext_vp = w_out_ref.shape[-1]            # lane-padded ext vocab (+ gen column)

    @pl.when(t == 0)
    def _():
        h_scr[...] = h0_ref[...]
        tok_scr[...] = jnp.full(tok_scr.shape, sos_id, jnp.int32)

    # --- embedding lookup via one-hot matmul ---------------------------------
    # TODO(synk): for a real vocab (tens of k) replace with an HBM row-gather DMA.
    tok = tok_scr[...]                                                  # [B, 1]
    onehot_tok = (jax.lax.broadcasted_iota(jnp.int32, (B, V), 1) == tok)
    emb = jnp.dot(onehot_tok.astype(jnp.bfloat16), embed_ref[...],
                  preferred_element_type=jnp.float32)                   # [B, E]

    # --- decoder GRU cell (gate math in f32) ---------------------------------
    h = h_scr[...]
    gi = jnp.dot(emb.astype(jnp.bfloat16), wih_ref[...],
                 preferred_element_type=jnp.float32) + bih_ref[...]
    gh = jnp.dot(h.astype(jnp.bfloat16), whh_ref[...],
                 preferred_element_type=jnp.float32) + bhh_ref[...]
    r = jax.nn.sigmoid(gi[:, 0:H] + gh[:, 0:H])
    z = jax.nn.sigmoid(gi[:, H:2 * H] + gh[:, H:2 * H])
    n = jnp.tanh(gi[:, 2 * H:3 * H] + r * gh[:, 2 * H:3 * H])
    h_new = (1.0 - z) * n + z * h
    h_scr[...] = h_new
    h_bf = h_new.astype(jnp.bfloat16)

    # --- masked bilinear attention: batched MXU contractions -----------------
    def attend(enc, mask, wa):
        q = jnp.dot(h_bf, wa, preferred_element_type=jnp.float32)       # [B,H]
        q3 = q.astype(jnp.bfloat16)[:, None, :]                         # [B,1,H]
        s = jnp.einsum('bqh,bsh->bqs', q3, enc,
                       preferred_element_type=jnp.float32)              # [B,1,S]
        m3 = mask[:, None, :]
        s = jnp.where(m3 > 0, s, -1e30)
        s = s - jnp.max(s, axis=-1, keepdims=True)
        e = jnp.exp(s) * m3
        inv = pl.reciprocal(jnp.sum(e, axis=-1, keepdims=True) + 1e-9,
                            approx=False)
        attn = (e * inv).astype(jnp.bfloat16)                           # [B,1,S]
        ctx = jnp.einsum('bqs,bsh->bqh', attn, enc,
                         preferred_element_type=jnp.float32)[:, 0, :]   # [B,H]
        return ctx, attn

    ctx_r, attn_r = attend(enc_ref[...], enc_mask_ref[...], wa_ref_ref[...])
    ctx_t, attn_t = attend(term_ref[...], term_mask_ref[...], wa_term_ref[...])

    # --- output projection over the padded extended vocab (+ folded p_gen) ---
    feat = jnp.concatenate([h_new, ctx_r, ctx_t], axis=-1).astype(jnp.bfloat16)
    logits = jnp.dot(feat, w_out_ref[...],
                     preferred_element_type=jnp.float32) + b_out_ref[...]  # [B, ext_vp]

    lane = jax.lax.broadcasted_iota(jnp.int32, (B, ext_vp), 1)
    gen_col = lane == (ext_vp - 1)                    # p_gen lives in last column
    p_gen = jax.nn.sigmoid(
        jnp.sum(jnp.where(gen_col, logits, 0.0), axis=-1, keepdims=True))  # [B,1]

    vlogits = jnp.where(gen_col, -1e30, logits)       # exclude gen column from softmax
    vlogits = vlogits - jnp.max(vlogits, axis=-1, keepdims=True)
    pe = jnp.exp(vlogits)
    p_vocab = pe * pl.reciprocal(jnp.sum(pe, axis=-1, keepdims=True), approx=False)

    # --- pointer mixing: in-kernel one-hot + batched MXU contraction ---------
    # TODO(synk): at realistic ext_V (tens of k), tile w_out / this one-hot over
    # the vocab axis with a streaming softmax + running argmax (v7x 64 MiB VMEM).
    def copy_dist(attn, ids, length):
        oh = (ids[:, :, None] ==
              jax.lax.broadcasted_iota(jnp.int32, (B, length, ext_vp), 2)
              ).astype(jnp.bfloat16)                                    # [B,L,ext_vp]
        return jnp.einsum('bqs,bsv->bqv', attn, oh,
                          preferred_element_type=jnp.float32)[:, 0, :]  # [B,ext_vp]

    copy_src = copy_dist(attn_r, o_s_ref[...], enc_ref.shape[1])
    copy_term = copy_dist(attn_t, o_term_ref[...], term_ref.shape[1])

    # TODO(synk): original decoder's copy-gate split is simplified to 0.5/0.5.
    p_out = p_gen * p_vocab + (1.0 - p_gen) * 0.5 * (copy_src + copy_term)
    p_slice = p_out[:, :ext_v]                         # drop pad + gen columns
    dist_ref[...] = p_slice

    # --- greedy next token (first-occurrence argmax), OOV copies -> UNK ------
    lane_f = jax.lax.broadcasted_iota(jnp.float32, (B, ext_v), 1)
    maxv = jnp.max(p_slice, axis=-1, keepdims=True)
    nxt = jnp.min(jnp.where(p_slice >= maxv, lane_f, float(ext_v)),
                  axis=-1, keepdims=True).astype(jnp.int32)             # [B,1]
    tok_ref[...] = nxt
    tok_scr[...] = jnp.where(nxt < V, nxt, unk_id).astype(jnp.int32)


# ----------------------------------------------------------------------------
# Pallas wrappers
# ----------------------------------------------------------------------------

def pallas_linear(x, w, b, activation="none", out_dtype=jnp.float32):
    n = x.shape[0]
    dout = w.shape[1]
    return pl.pallas_call(
        functools.partial(linear_kernel, activation=activation),
        out_shape=jax.ShapeDtypeStruct((n, dout), out_dtype),
    )(x, w, b)


def gru_encode(gi_bsh, m_bs1, whh, bhh, *, tc):
    """gi_bsh: [B, S, 3H] precomputed input projections, m_bs1: [B, S, 1]."""
    B, S, H3 = gi_bsh.shape
    H = H3 // 3
    # TODO(synk): for v7x, add a leading 'parallel' batch grid axis to shard
    # the recurrence over the 2 TensorCores (B=2 demo makes this moot).
    out, h_last = pl.pallas_call(
        functools.partial(gru_recur_kernel, tc=tc),
        out_shape=(jax.ShapeDtypeStruct((B, S, H), jnp.bfloat16),
                   jax.ShapeDtypeStruct((B, H), jnp.float32)),
        grid_spec=pltpu.PrefetchScalarGridSpec(
            num_scalar_prefetch=0,
            grid=(S // tc,),
            in_specs=[
                pl.BlockSpec((B, tc, 3 * H), lambda c: (0, c, 0)),
                pl.BlockSpec((B, tc, 1), lambda c: (0, c, 0)),
                pl.BlockSpec((H, 3 * H), lambda c: (0, 0)),
                pl.BlockSpec((1, 3 * H), lambda c: (0, 0)),
            ],
            out_specs=(
                pl.BlockSpec((B, tc, H), lambda c: (0, c, 0)),
                pl.BlockSpec((B, H), lambda c: (0, 0)),
            ),
            scratch_shapes=[pltpu.VMEM((B, H), jnp.float32),
                            pltpu.VMEM((B, tc, H), jnp.float32)],
        ),
        compiler_params=pltpu.CompilerParams(dimension_semantics=("arbitrary",)),
    )(gi_bsh, m_bs1, whh, bhh)
    return out, h_last


def fused_greedy_decode(params, enc_out, enc_mask, term_out, term_mask,
                        batch_o_s, batch_o_term, h0, max_len, ext_V,
                        sos_id=2, unk_id=1):
    """Single pallas_call over all decode steps; state + weights VMEM-resident."""
    B, S, H = enc_out.shape
    Tt = term_out.shape[1]
    V, E = params['embed'].shape
    ext_Vp = params['w_out_ext'].shape[-1]

    c2 = lambda t: (0, 0)
    c3 = lambda t: (0, 0, 0)

    # TODO(synk): for realistic sizes, tile w_out / pointer mix over ext_V with a
    # streaming softmax, set vmem_limit_bytes per chip generation, and add a
    # 'parallel' batch axis for v7x's 2 TensorCores.
    dists, toks = pl.pallas_call(
        functools.partial(fused_decoder_kernel, sos_id=sos_id, unk_id=unk_id),
        out_shape=(jax.ShapeDtypeStruct((max_len, B, ext_V), jnp.float32),
                   jax.ShapeDtypeStruct((max_len, B, 1), jnp.int32)),
        grid_spec=pltpu.PrefetchScalarGridSpec(
            num_scalar_prefetch=0,
            grid=(max_len,),
            in_specs=[
                pl.BlockSpec((V, E), c2),              # embed (bf16)
                pl.BlockSpec((B, S, H), c3),           # encoder outputs (bf16)
                pl.BlockSpec((B, S), c2),              # encoder mask
                pl.BlockSpec((B, Tt, H), c3),          # term outputs (bf16)
                pl.BlockSpec((B, Tt), c2),             # term mask
                pl.BlockSpec((B, S), c2),              # batch_o_s (int32)
                pl.BlockSpec((B, Tt), c2),             # batch_o_term (int32)
                pl.BlockSpec((B, H), c2),              # initial hidden
                pl.BlockSpec((E, 3 * H), c2),          # dec W_ih
                pl.BlockSpec((H, 3 * H), c2),          # dec W_hh
                pl.BlockSpec((1, 3 * H), c2),          # dec b_ih
                pl.BlockSpec((1, 3 * H), c2),          # dec b_hh
                pl.BlockSpec((H, H), c2),              # attn W (source)
                pl.BlockSpec((H, H), c2),              # attn W (terms)
                pl.BlockSpec((3 * H, ext_Vp), c2),     # W_out (padded, + gen col)
                pl.BlockSpec((1, ext_Vp), c2),         # b_out (padded, + gen bias)
            ],
            out_specs=(pl.BlockSpec((None, B, ext_V), lambda t: (t, 0, 0)),
                       pl.BlockSpec((None, B, 1), lambda t: (t, 0, 0))),
            scratch_shapes=[pltpu.VMEM((B, H), jnp.float32),   # hidden state
                            pltpu.VMEM((B, 1), jnp.int32)],    # current token
        ),
        compiler_params=pltpu.CompilerParams(dimension_semantics=("arbitrary",)),
    )(params['embed'], enc_out, enc_mask, term_out, term_mask,
      batch_o_s, batch_o_term, h0,
      params['dec_wih'], params['dec_whh'], params['dec_bih'], params['dec_bhh'],
      params['wa_ref'], params['wa_term'], params['w_out_ext'], params['b_out_ext'])
    return dists, toks


# ----------------------------------------------------------------------------
# Parameters
# ----------------------------------------------------------------------------

def init_params(key, V, E, H, max_source_oov):
    ks = jax.random.split(key, 16)

    def w(k, shape, scale=0.1):
        return (scale * jax.random.normal(k, shape)).astype(jnp.float32)

    ext_V = V + max_source_oov
    ext_Vp = _round_up(ext_V + 1, 128)       # lane-padded, +1 for the folded gen column
    w_out = w(ks[13], (3 * H, V))
    b_out = w(ks[14], (1, V))
    w_gen = w(ks[15], (3 * H, 1))
    b_gen = jnp.zeros((1, 1), jnp.float32)
    pad = ext_Vp - V - 1
    # OOV/padded columns get -1e9 bias -> ~zero generation probability; the
    # p_gen projection is folded into the last column (no separate matmul).
    w_out_ext = jnp.concatenate([w_out, jnp.zeros((3 * H, pad), jnp.float32), w_gen], axis=1)
    b_out_ext = jnp.concatenate([b_out, jnp.full((1, pad), -1e9, jnp.float32), b_gen], axis=1)

    bf = jnp.bfloat16
    params = dict(
        embed=w(ks[0], (V, E)).astype(bf),          # shared embedding
        enc_wih=w(ks[1], (E, 3 * H)).astype(bf), enc_whh=w(ks[2], (H, 3 * H)).astype(bf),
        enc_bih=w(ks[3], (1, 3 * H)), enc_bhh=w(ks[4], (1, 3 * H)),
        term_w=w(ks[5], (E, H)).astype(bf), term_b=w(ks[6], (1, H)),
        dec_wih=w(ks[7], (E, 3 * H)).astype(bf), dec_whh=w(ks[8], (H, 3 * H)).astype(bf),
        dec_bih=w(ks[9], (1, 3 * H)), dec_bhh=w(ks[10], (1, 3 * H)),
        wa_ref=w(ks[11], (H, H)).astype(bf), wa_term=w(ks[12], (H, H)).astype(bf),
        w_out_ext=w_out_ext.astype(bf), b_out_ext=b_out_ext,
    )
    return params


# ----------------------------------------------------------------------------
# Seq2seq forward (mirrors the PyTorch module's forward control flow)
# ----------------------------------------------------------------------------

def seq2seq_forward(params, batch_s, batch_o_s, source_len, max_source_oov,
                    batch_term, batch_o_term, batch_t=None, batch_o_t=None,
                    teacher_forcing_ratio=0, beam=False, stopwords=None,
                    sflag=False, max_len=6, enc_chunk=8):
    # TODO(synk): beam search / teacher forcing / stopword handling from the
    # original decoder are not reproduced (greedy decode only, tf_ratio=0).
    B, S = batch_s.shape
    V, E = params['embed'].shape
    H = params['enc_whh'].shape[0]
    ext_V = V + max_source_oov
    tc = enc_chunk if (S % enc_chunk == 0) else S

    # --- ref_encoder: embedding + masked GRU (chunked recurrence) ------------
    x_emb = params['embed'][batch_s]                                    # [B,S,E] bf16
    enc_mask = (jnp.arange(S)[None, :] < source_len[:, None]).astype(jnp.float32)  # [B,S]
    # hoisted, MXU-dense input projection (no recurrent dependency):
    gi = pallas_linear(x_emb.reshape(B * S, E), params['enc_wih'],
                       params['enc_bih']).reshape(B, S, 3 * H)          # [B,S,3H] f32
    encoder_outputs, encoder_hidden = gru_encode(
        gi, enc_mask[:, :, None], params['enc_whh'], params['enc_bhh'], tc=tc)
    # encoder_outputs: [B,S,H] bf16, encoder_hidden: [B,H] f32 (no transposes)

    # --- term_encoder: embedding + linear projection (tanh fused) ------------
    Tt = batch_term.shape[1]
    t_emb = params['embed'][batch_term]                                 # [B,Tt,E] bf16
    term_output = pallas_linear(t_emb.reshape(B * Tt, E), params['term_w'],
                                params['term_b'], activation="tanh",
                                out_dtype=jnp.bfloat16).reshape(B, Tt, H)
    term_mask = (batch_term != 0).astype(jnp.float32)                   # [B,Tt]

    # --- decoder: fused greedy pointer-generator decoding (single kernel) ----
    dists, toks = fused_greedy_decode(
        params, encoder_outputs, enc_mask, term_output, term_mask,
        batch_o_s.astype(jnp.int32), batch_o_term.astype(jnp.int32),
        encoder_hidden, max_len, ext_V)
    final_dists = jnp.transpose(dists, (1, 0, 2))                       # [B,max_len,ext_V]
    decoded_ids = jnp.transpose(toks[:, :, 0], (1, 0))                  # [B,max_len]
    return decoded_ids, final_dists


# ----------------------------------------------------------------------------
# Demo
# ----------------------------------------------------------------------------

if __name__ == "__main__":
    B, S, Tt = 2, 16, 8
    V, E, H = 120, 128, 128          # lane-dense: E=H=128, 3H=384, V+oov=128
    max_source_oov = 8
    max_len = 6

    key = jax.random.PRNGKey(0)
    ks = jax.random.split(key, 4)

    source_len = jnp.array([16, 11], dtype=jnp.int32)
    batch_s = jax.random.randint(ks[0], (B, S), 3, V, dtype=jnp.int32)
    pos = jnp.arange(S)[None, :]
    batch_s = jnp.where(pos < source_len[:, None], batch_s, 0)
    # extended-vocab view of the source (inject a couple of OOV ids >= V)
    batch_o_s = batch_s.at[0, 2].set(V + 1).at[1, 1].set(V + 3)

    batch_term = jax.random.randint(ks[1], (B, Tt), 3, V, dtype=jnp.int32)
    batch_term = batch_term.at[1, 7].set(0)                             # one padded term
    batch_o_term = batch_term.at[0, 0].set(V + 2)

    params = init_params(jax.random.PRNGKey(42), V, E, H, max_source_oov)

    decoded_ids, final_dists = seq2seq_forward(
        params, batch_s, batch_o_s, source_len, max_source_oov,
        batch_term, batch_o_term, teacher_forcing_ratio=0, max_len=max_len)

    jax.block_until_ready((decoded_ids, final_dists))
    assert decoded_ids.shape == (B, max_len)
    assert final_dists.shape == (B, max_len, V + max_source_oov)
    print("KERNEL_OK")
</pallas_src>

<mosaic_0001>
module attributes {stable_mosaic.version = 11 : i64} {
  func.func @linear_kernel(%arg0: memref<32x128xbf16, #tpu.memory_space<vmem>>, %arg1: memref<128x384xbf16, #tpu.memory_space<vmem>>, %arg2: memref<1x384xf32, #tpu.memory_space<vmem>>, %arg3: memref<32x384xf32, #tpu.memory_space<vmem>>) attributes {dimension_semantics = [], scalar_prefetch = 0 : i64, scratch_operands = 0 : i64, tpu.core_type = #tpu.core_type<tc>} {
    %c0 = arith.constant 0 : index
    %c0_0 = arith.constant 0 : index
    %0 = vector.load %arg0[%c0, %c0_0] : memref<32x128xbf16, #tpu.memory_space<vmem>>, vector<32x128xbf16>
    %c0_1 = arith.constant 0 : index
    %c0_2 = arith.constant 0 : index
    %1 = vector.load %arg1[%c0_1, %c0_2] : memref<128x384xbf16, #tpu.memory_space<vmem>>, vector<128x384xbf16>
    %cst = arith.constant dense<0.000000e+00> : vector<32x384xf32>
    %2 = tpu.matmul %0, %1, %cst {dimension_numbers = #tpu.dot_dimension_numbers<[1], [0], [0], [1], [0, 0, 1, 1], [], []>} : vector<32x128xbf16>, vector<128x384xbf16>, vector<32x384xf32> -> vector<32x384xf32>
    %c0_3 = arith.constant 0 : index
    %c0_4 = arith.constant 0 : index
    %3 = vector.load %arg2[%c0_3, %c0_4] : memref<1x384xf32, #tpu.memory_space<vmem>>, vector<1x384xf32>
    %4 = vector.broadcast %3 : vector<1x384xf32> to vector<32x384xf32>
    %5 = arith.addf %2, %4 : vector<32x384xf32>
    %c0_5 = arith.constant 0 : index
    %c0_6 = arith.constant 0 : index
    %6 = vector.load %arg3[%c0_5, %c0_6] : memref<32x384xf32, #tpu.memory_space<vmem>>, vector<32x384xf32>
    tpu.vector_store %arg3[%c0_5, %c0_6], %5 {strides = array<i32>} : memref<32x384xf32, #tpu.memory_space<vmem>>, vector<32x384xf32>,
    return
  }
}

</mosaic_0001>

<llo_original>
// kernel: tpu_custom_call.1
$region0: #{tpu_custom_call.1}
  #allocation0 [shape = 'u32[]', space=smem, size = 0x4, offset = 0x4, fixed_abs, tag = 'smem constant byte address 0x4 - core index']
  #allocation1 [shape = 'u32[144,128]{1,0:T(1,128)}', space=vmem, size = 0x12000, scoped, tag = 'internal scratch']
  %s0 = inlined_call_operand.hbm [shape: bf16[32,128], index: 0, kind: input, shape index: {}]
  %s1 = inlined_call_operand.hbm [shape: bf16[128,384], index: 1, kind: input, shape index: {}]
  %s2 = inlined_call_operand.vmem [shape: f32[1,384], index: 2, kind: input, shape index: {}]
  %s3 = inlined_call_operand.hbm [shape: f32[32,384], index: 3, kind: output, shape index: {}]
  %s4 = sld [smem:[#allocation0]]
  $region30: #{tpu_custom_call.1} parent=0
    _
  %s6 = ssub.s32 1, %s4
  %s7 = scalar_select 0, %s6, %s4
  $region1: #{tpu_custom_call.1} parent=0
    #allocation2 [shape = 'u8[8192]{0}', space=vmem, size = 0x2000, scoped, tag = 'input window, operand 0, single buffered']
    #allocation3 [shape = 's32[1]{0}', space=sflag, size = 0x4, scoped, tag = 'scoped memory for tpu_custom_call.1']
    #allocation4 [shape = 's32[1]{0}', space=sflag, size = 0x4, scoped, tag = 'scoped memory for tpu_custom_call.1']
    #allocation5 [shape = 'u8[98304]{0}', space=vmem, size = 0x18000, scoped, tag = 'input window, operand 1, single buffered']
    #allocation6 [shape = 's32[1]{0}', space=sflag, size = 0x4, scoped, tag = 'scoped memory for tpu_custom_call.1']
    #allocation7 [shape = 'u8[49152]{0}', space=vmem, size = 0xc000, scoped, tag = 'output window, operand 0, single buffered']
    %8 = vsyncpa [#allocation3], 0
    %9 = vsyncpa [#allocation6], 0
    %10 = vsyncpa [#allocation4], 0
    // Predicated region
    $region2: #{tpu_custom_call.1} parent=1 // pred_check
      _
    $region3: #{tpu_custom_call.1} parent=1 // pred_check_branch
      %12 = sbr.rel (0) target = $region5
    $region4: #{tpu_custom_call.1} parent=1 // pred_region
      %s14 = ssub.s32 256, 256
      %15 = vsyncadd [#allocation3], %s14
      %s16 = sshll.u32 [#allocation2], 4
      %s17 = int_to_ptr.vmem [resolvable:$true] %s16
      %22 = dma.hbm_to_vmem [thread:$0]  %s0, 256, %s17, [#allocation3], 64, 64, 4
    $region5: #{tpu_custom_call.1} parent=1 // pred_fallthru
      _
    // Predicated region
    $region6: #{tpu_custom_call.1} parent=1 // pred_check
      _
    $region7: #{tpu_custom_call.1} parent=1 // pred_check_branch
      %24 = sbr.rel (0) target = $region9
    $region8: #{tpu_custom_call.1} parent=1 // pred_region
      %s26 = ssub.s32 3072, 3072
      %27 = vsyncadd [#allocation6], %s26
      %s28 = sshll.u32 [#allocation5], 4
      %s29 = int_to_ptr.vmem [resolvable:$true] %s28
      %34 = dma.hbm_to_vmem [thread:$0]  %s1, 3072, %s29, [#allocation6], 192, 192, 12
    $region9: #{tpu_custom_call.1} parent=1 // pred_fallthru
      _
    // Predicated region
    $region10: #{tpu_custom_call.1} parent=1 // pred_check
      _
    $region11: #{tpu_custom_call.1} parent=1 // pred_check_branch
      %36 = sbr.rel (0) target = $region13
    $region12: #{tpu_custom_call.1} parent=1 // pred_region
      _
    $region13: #{tpu_custom_call.1} parent=1 // pred_fallthru
      _
    // Predicated region
    $region14: #{tpu_custom_call.1} parent=1 // pred_check
      _
    $region15: #{tpu_custom_call.1} parent=1 // pred_check_branch
      %38 = sbr.rel (0) target = $region17
    $region16: #{tpu_custom_call.1} parent=1 // pred_region
      %39 = dma.done [#allocation3], 256
    $region17: #{tpu_custom_call.1} parent=1 // pred_fallthru
      _
    // Predicated region
    $region18: #{tpu_custom_call.1} parent=1 // pred_check
      _
    $region19: #{tpu_custom_call.1} parent=1 // pred_check_branch
      %41 = sbr.rel (0) target = $region21
    $region20: #{tpu_custom_call.1} parent=1 // pred_region
      %42 = dma.done [#allocation6], 3072
    $region21: #{tpu_custom_call.1} parent=1 // pred_fallthru
      _
    %v44 = vld [vmem:[#allocation2] sm:$0xf]
    %v45 = vld [vmem:[#allocation2 + $0x4] sm:$0xf]
    %v46 = vld [vmem:[#allocation2 + $0x8] sm:$0xf]
    %v47 = vld [vmem:[#allocation2 + $0xc] sm:$0xf]
    %v48 = vld [vmem:[#allocation5] sm:$0xff]
    %v49 = vld [vmem:[#allocation5 + $0x8] sm:$0xf]
    %v50 = vld [vmem:[#allocation5 + $0xc] sm:$0xff]
    %v51 = vld [vmem:[#allocation5 + $0x14] sm:$0xf]
    %v52 = vld [vmem:[#allocation5 + $0x18] sm:$0xff]
    %v53 = vld [vmem:[#allocation5 + $0x20] sm:$0xf]
    %v54 = vld [vmem:[#allocation5 + $0x24] sm:$0xff]
    %v55 = vld [vmem:[#allocation5 + $0x2c] sm:$0xf]
    %v56 = vld [vmem:[#allocation5 + $0x30] sm:$0xff]
    %v57 = vld [vmem:[#allocation5 + $0x38] sm:$0xf]
    %v58 = vld [vmem:[#allocation5 + $0x3c] sm:$0xff]
    %v59 = vld [vmem:[#allocation5 + $0x44] sm:$0xf]
    %v60 = vld [vmem:[#allocation5 + $0x48] sm:$0xff]
    %v61 = vld [vmem:[#allocation5 + $0x50] sm:$0xf]
    %v62 = vld [vmem:[#allocation5 + $0x54] sm:$0xff]
    %v63 = vld [vmem:[#allocation5 + $0x5c] sm:$0xf]
    %v64 = vld [vmem:[#allocation5 + $0x60] sm:$0xff]
    %v65 = vld [vmem:[#allocation5 + $0x68] sm:$0xf]
    %v66 = vld [vmem:[#allocation5 + $0x6c] sm:$0xff]
    %v67 = vld [vmem:[#allocation5 + $0x74] sm:$0xf]
    %v68 = vld [vmem:[#allocation5 + $0x78] sm:$0xff]
    %v69 = vld [vmem:[#allocation5 + $0x80] sm:$0xf]
    %v70 = vld [vmem:[#allocation5 + $0x84] sm:$0xff]
    %v71 = vld [vmem:[#allocation5 + $0x8c] sm:$0xf]
    %v72 = vld [vmem:[#allocation5 + $0x90] sm:$0xff]
    %v73 = vld [vmem:[#allocation5 + $0x98] sm:$0xf]
    %v74 = vld [vmem:[#allocation5 + $0x9c] sm:$0xff]
    %v75 = vld [vmem:[#allocation5 + $0xa4] sm:$0xf]
    %v76 = vld [vmem:[#allocation5 + $0xa8] sm:$0xff]
    %v77 = vld [vmem:[#allocation5 + $0xb0] sm:$0xf]
    %v78 = vld [vmem:[#allocation5 + $0xb4] sm:$0xff]
    %v79 = vld [vmem:[#allocation5 + $0xbc] sm:$0xf]
    %v80 = vld [vmem:[%s2] sm:$0x7]
    %v82 = vlaneseq
    %v83 = vshrl.u32 %v82, 7
    %v84 = vsub.s32 0, %v83
    %v85 = vrot.slane %v80, %v84
    %v86 = vlaneseq
    %v87 = vshrl.u32 %v86, 7
    %v88 = vsub.s32 1, %v87
    %v89 = vrot.slane %v80, %v88
    %v90 = vlaneseq
    %v91 = vshrl.u32 %v90, 7
    %v92 = vsub.s32 2, %v91
    %v93 = vrot.slane %v80, %v92
    %v101 = vunpack.c.l.b16 %v44
    %v102 = vunpack.c.l.b16 %v45
    %v103 = vunpack.c.l.b16 %v46
    %v104 = vunpack.c.l.b16 %v47
    %v105 = vpack.c.b16 %v102, %v101
    %v106 = vpack.c.b16 %v104, %v103
    %v141 = vunpack.c.l.b16 %v48
    %v142 = vunpack.c.h.b16 %v48
    %v143 = vunpack.c.l.b16 %v49
    %v144 = vunpack.c.l.b16 %v50
    %v145 = vunpack.c.h.b16 %v50
    %v146 = vunpack.c.l.b16 %v51
    %v147 = vunpack.c.l.b16 %v52
    %v148 = vunpack.c.h.b16 %v52
    %v149 = vunpack.c.l.b16 %v53
    %v150 = vunpack.c.l.b16 %v54
    %v151 = vunpack.c.h.b16 %v54
    %v152 = vunpack.c.l.b16 %v55
    %v153 = vunpack.c.l.b16 %v56
    %v154 = vunpack.c.h.b16 %v56
    %v155 = vunpack.c.l.b16 %v57
    %v156 = vunpack.c.l.b16 %v58
    %v157 = vunpack.c.h.b16 %v58
    %v158 = vunpack.c.l.b16 %v59
    %v159 = vunpack.c.l.b16 %v60
    %v160 = vunpack.c.h.b16 %v60
    %v161 = vunpack.c.l.b16 %v61
    %v162 = vunpack.c.l.b16 %v62
    %v163 = vunpack.c.h.b16 %v62
    %v164 = vunpack.c.l.b16 %v63
    %v165 = vunpack.c.l.b16 %v64
    %v166 = vunpack.c.h.b16 %v64
    %v167 = vunpack.c.l.b16 %v65
    %v168 = vunpack.c.l.b16 %v66
    %v169 = vunpack.c.h.b16 %v66
    %v170 = vunpack.c.l.b16 %v67
    %v171 = vunpack.c.l.b16 %v68
    %v172 = vunpack.c.h.b16 %v68
    %v173 = vunpack.c.l.b16 %v69
    %v174 = vunpack.c.l.b16 %v70
    %v175 = vunpack.c.h.b16 %v70
    %v176 = vunpack.c.l.b16 %v71
    %v177 = vunpack.c.l.b16 %v72
    %v178 = vunpack.c.h.b16 %v72
    %v179 = vunpack.c.l.b16 %v73
    %v180 = vunpack.c.l.b16 %v74
    %v181 = vunpack.c.h.b16 %v74
    %v182 = vunpack.c.l.b16 %v75
    %v183 = vunpack.c.l.b16 %v76
    %v184 = vunpack.c.h.b16 %v76
    %v185 = vunpack.c.l.b16 %v77
    %v186 = vunpack.c.l.b16 %v78
    %v187 = vunpack.c.h.b16 %v78
    %v188 = vunpack.c.l.b16 %v79
    %v189 = vpack.c.b16 %v144, %v141
    %v190 = vpack.c.b16 %v145, %v142
    %v191 = vpack.c.b16 %v146, %v143
    %v192 = vpack.c.b16 %v150, %v147
    %v193 = vpack.c.b16 %v151, %v148
    %v194 = vpack.c.b16 %v152, %v149
    %v195 = vpack.c.b16 %v156, %v153
    %v196 = vpack.c.b16 %v157, %v154
    %v197 = vpack.c.b16 %v158, %v155
    %v198 = vpack.c.b16 %v162, %v159
    %v199 = vpack.c.b16 %v163, %v160
    %v200 = vpack.c.b16 %v164, %v161
    %v201 = vpack.c.b16 %v168, %v165
    %v202 = vpack.c.b16 %v169, %v166
    %v203 = vpack.c.b16 %v170, %v167
    %v204 = vpack.c.b16 %v174, %v171
    %v205 = vpack.c.b16 %v175, %v172
    %v206 = vpack.c.b16 %v176, %v173
    %v207 = vpack.c.b16 %v180, %v177
    %v208 = vpack.c.b16 %v181, %v178
    %v209 = vpack.c.b16 %v182, %v179
    %v210 = vpack.c.b16 %v186, %v183
    %v211 = vpack.c.b16 %v187, %v184
    %v212 = vpack.c.b16 %v188, %v185
    %237 = vmatprep.subr.bf16.mxu0 %v190
    %238 = vmatpush1.bf16.msra.mxu0 %v189
    %239 = vmatprep.subr.bf16.mxu0 %v193
    %240 = vmatpush1.bf16.msra.mxu0 %v192
    %241 = vmatprep.subr.bf16.mxu0 %v196
    %242 = vmatpush1.bf16.msra.mxu0 %v195
    %243 = vmatprep.subr.bf16.mxu0 %v199
    %244 = vmatpush1.bf16.msra.mxu0 %v198
    %245 = vmatprep.subr.bf16.mxu0 %v202
    %246 = vmatpush1.bf16.msra.mxu0 %v201
    %247 = vmatprep.subr.bf16.mxu0 %v205
    %248 = vmatpush1.bf16.msra.mxu0 %v204
    %249 = vmatprep.subr.bf16.mxu0 %v208
    %250 = vmatpush1.bf16.msra.mxu0 %v207
    %251 = vmatprep.subr.bf16.mxu0 %v211
    %252 = vmatpush1.bf16.msra.mxu0 %v210
    %253 = vmatprep.subr.bf16.mxu0 0
    %254 = vmatpush1.bf16.msra.mxu0 0
    %255 = vmatprep.subr.bf16.mxu0 0
    %256 = vmatpush1.bf16.msra.mxu0 0
    %257 = vmatprep.subr.bf16.mxu0 0
    %258 = vmatpush1.bf16.msra.mxu0 0
    %259 = vmatprep.subr.bf16.mxu0 0
    %260 = vmatpush1.bf16.msra.mxu0 0
    %261 = vmatprep.subr.bf16.mxu0 0
    %262 = vmatpush1.bf16.msra.mxu0 0
    %263 = vmatprep.subr.bf16.mxu0 0
    %264 = vmatpush1.bf16.msra.mxu0 0
    %265 = vmatprep.subr.bf16.mxu0 0
    %266 = vmatpush1.bf16.msra.mxu0 0
    %267 = vmatprep.subr.bf16.mxu0 0
    %268 = vmatpush1.bf16.msra.mxu0 0
    %269 = vmatprep.mubr.bf16.mxu0 0
    %270 = vmatmul.mubr.bf16.gmra.mrb[0].mxu0 %v105
    %v271 = vpop.f32.mrb[0].mxu0
    %v272 = vadd.f32 %v85, %v271
    %v273 = vpop.f32.mrb[0].mxu0
    %v274 = vadd.f32 %v89, %v273
    %v275 = vpop.f32.mrb[0].mxu0
    %v276 = vadd.f32 %v85, %v275
    %v277 = vpop.f32.mrb[0].mxu0
    %v278 = vadd.f32 %v89, %v277
    %279 = vmatprep.mubr.bf16.mxu0 0
    %280 = vmatmul.mubr.bf16.gmra.mrb[0].mxu0 %v106
    %v281 = vpop.f32.mrb[0].mxu0
    %v282 = vadd.f32 %v85, %v281
    %v283 = vpop.f32.mrb[0].mxu0
    %v284 = vadd.f32 %v89, %v283
    %v285 = vpop.f32.mrb[0].mxu0
    %v286 = vadd.f32 %v85, %v285
    %v287 = vpop.f32.mrb[0].mxu0
    %v288 = vadd.f32 %v89, %v287
    %289 = vdwg.mxu0
    %290 = vmatprep.subr.bf16.mxu0 0
    %291 = vmatpush1.bf16.msra.mxu0 %v191
    %292 = vmatprep.subr.bf16.mxu0 0
    %293 = vmatpush1.bf16.msra.mxu0 %v194
    %294 = vmatprep.subr.bf16.mxu0 0
    %295 = vmatpush1.bf16.msra.mxu0 %v197
    %296 = vmatprep.subr.bf16.mxu0 0
    %297 = vmatpush1.bf16.msra.mxu0 %v200
    %298 = vmatprep.subr.bf16.mxu0 0
    %299 = vmatpush1.bf16.msra.mxu0 %v203
    %300 = vmatprep.subr.bf16.mxu0 0
    %301 = vmatpush1.bf16.msra.mxu0 %v206
    %302 = vmatprep.subr.bf16.mxu0 0
    %303 = vmatpush1.bf16.msra.mxu0 %v209
    %304 = vmatprep.subr.bf16.mxu0 0
    %305 = vmatpush1.bf16.msra.mxu0 %v212
    %306 = vmatprep.subr.bf16.mxu0 0
    %307 = vmatpush1.bf16.msra.mxu0 0
    %308 = vmatprep.subr.bf16.mxu0 0
    %309 = vmatpush1.bf16.msra.mxu0 0
    %310 = vmatprep.subr.bf16.mxu0 0
    %311 = vmatpush1.bf16.msra.mxu0 0
    %312 = vmatprep.subr.bf16.mxu0 0
    %313 = vmatpush1.bf16.msra.mxu0 0
    %314 = vmatprep.subr.bf16.mxu0 0
    %315 = vmatpush1.bf16.msra.mxu0 0
    %316 = vmatprep.subr.bf16.mxu0 0
    %317 = vmatpush1.bf16.msra.mxu0 0
    %318 = vmatprep.subr.bf16.mxu0 0
    %319 = vmatpush1.bf16.msra.mxu0 0
    %320 = vmatprep.subr.bf16.mxu0 0
    %321 = vmatpush1.bf16.msra.mxu0 0
    %322 = vmatprep.mubr.bf16.mxu0 0
    %323 = vmatmul.mubr.bf16.gmra.mrb[0].mxu0 %v105
    %v324 = vpop.f32.mrb[0].mxu0
    %v325 = vadd.f32 %v93, %v324
    %v326 = vpop.f32.mrb[0].mxu0
    %v327 = vpop.f32.mrb[0].mxu0
    %v328 = vadd.f32 %v93, %v327
    %v329 = vpop.f32.mrb[0].mxu0
    %330 = vmatprep.mubr.bf16.mxu0 0
    %331 = vmatmul.mubr.bf16.gmra.mrb[0].mxu0 %v106
    %v332 = vpop.f32.mrb[0].mxu0
    %v333 = vadd.f32 %v93, %v332
    %v334 = vpop.f32.mrb[0].mxu0
    %v335 = vpop.f32.mrb[0].mxu0
    %v336 = vadd.f32 %v93, %v335
    %v337 = vpop.f32.mrb[0].mxu0
    %338 = vdwg.mxu0
    %339 = vst [vmem:[#allocation7] sm:$0xff] %v272
    %340 = vst [vmem:[#allocation7 + $0x8] sm:$0xff] %v274
    %341 = vst [vmem:[#allocation7 + $0x10] sm:$0xff] %v325
    %342 = vst [vmem:[#allocation7 + $0x18] sm:$0xff] %v276
    %343 = vst [vmem:[#allocation7 + $0x20] sm:$0xff] %v278
    %344 = vst [vmem:[#allocation7 + $0x28] sm:$0xff] %v328
    %345 = vst [vmem:[#allocation7 + $0x30] sm:$0xff] %v282
    %346 = vst [vmem:[#allocation7 + $0x38] sm:$0xff] %v284
    %347 = vst [vmem:[#allocation7 + $0x40] sm:$0xff] %v333
    %348 = vst [vmem:[#allocation7 + $0x48] sm:$0xff] %v286
    %349 = vst [vmem:[#allocation7 + $0x50] sm:$0xff] %v288
    %350 = vst [vmem:[#allocation7 + $0x58] sm:$0xff] %v336
    // Predicated region
    $region22: #{tpu_custom_call.1} parent=1 // pred_check
      _
    $region23: #{tpu_custom_call.1} parent=1 // pred_check_branch
      %352 = sbr.rel (0) target = $region25
    $region24: #{tpu_custom_call.1} parent=1 // pred_region
      %s354 = ssub.s32 1536, 1536
      %355 = vsyncadd [#allocation4], %s354
      %s356 = sshll.u32 [#allocation7], 4
      %s357 = int_to_ptr.vmem [resolvable:$true] %s356
      %362 = dma.vmem_to_hbm [thread:$0]  %s357, 1536, %s3, [#allocation4], 384, 384, 24
    $region25: #{tpu_custom_call.1} parent=1 // pred_fallthru
      _
    // Predicated region
    $region26: #{tpu_custom_call.1} parent=1 // pred_check
      _
    $region27: #{tpu_custom_call.1} parent=1 // pred_check_branch
      %364 = sbr.rel (0) target = $region29
    $region28: #{tpu_custom_call.1} parent=1 // pred_region
      %365 = dma.done [#allocation4], 1536
    $region29: #{tpu_custom_call.1} parent=1 // pred_fallthru
      _
    %366 = vsyncpa [#allocation3], 1
    %367 = vsyncpa [#allocation6], 1
    %368 = vsyncpa [#allocation4], 1

</llo_original>
